<compile_context>
chip_gen: v5e
topology: v5e:2x2
jax: 0.10.0
libtpu: 0.0.40
codegen_flags: <defaults>
</compile_context>

<pallas_src>
import functools

import jax
import jax.numpy as jnp
import numpy as np
from jax.experimental import pallas as pl
from jax.experimental.pallas import tpu as pltpu


# ----------------------------------------------------------------------------
# VMEM budgeting (generation-aware).
# ----------------------------------------------------------------------------
def _vmem_budget_and_limit(override=None):
    try:
        cap = int(pltpu.get_tpu_info().vmem_capacity_bytes)
    except Exception:
        cap = 64 << 20                      # conservative: v7x per-TC VMEM
    limit = min(cap * 3 // 4, 96 << 20)     # scoped limit handed to Mosaic
    budget = int(limit * 0.85) if override is None else min(int(override), limit)
    return budget, limit


def _divisors(n):
    ds = []
    i = 1
    while i * i <= n:
        if n % i == 0:
            ds.append(i)
            ds.append(n // i)
        i += 1
    return ds


def _pick_hw_tile(HW, bytes_per_lane, budget_bytes):
    """Largest HW tile (multiple of 128, dividing HW) whose resident footprint
    (all streams x pipeline buffers, = bytes_per_lane per lane) fits budget."""
    max_lanes = max(128, budget_bytes // max(1, bytes_per_lane))
    if HW <= max_lanes:
        return HW
    fitting = [d for d in _divisors(HW) if d <= max_lanes and d % 128 == 0]
    if fitting:
        return max(fitting)
    # TODO(synk): ragged HW (no multiple-of-128 divisor fits) — fall back to a
    # single full-HW block; padding HW to a multiple of 128 would be better.
    return HW


def _full_spec(arr):
    ndim = arr.ndim
    return pl.BlockSpec(arr.shape, lambda *_: (0,) * ndim)


# ----------------------------------------------------------------------------
# Shared MLP epilogue on column vectors (C stays on sublanes, no relayout).
# Weights are PyTorch-native (out, in); biases are (out, 1) columns.
# ----------------------------------------------------------------------------
def _attention_from_gap(gs, gd, wl1, bl1, wr1, br1, wl2, bl2, wr2, br2):
    left = jnp.maximum(
        jnp.dot(wl1[...], gs + gd, preferred_element_type=jnp.float32)
        + bl1[...], 0.0)
    right = jnp.maximum(
        jnp.dot(wr1[...], gd, preferred_element_type=jnp.float32)
        + br1[...], 0.0)
    fusion = left + right
    attn_l = jax.nn.sigmoid(
        jnp.dot(wl2[...], fusion, preferred_element_type=jnp.float32) + bl2[...])
    attn_r = jax.nn.sigmoid(
        jnp.dot(wr2[...], fusion, preferred_element_type=jnp.float32) + br2[...])
    return attn_l, attn_r                    # each (C, 1), f32


# ----------------------------------------------------------------------------
# Fused single-pass kernel: one batch element per grid step, S/D read once.
# ----------------------------------------------------------------------------
def _fused_kernel(s_ref, d_ref,
                  wl1, bl1, wr1, br1, wl2, bl2, wr2, br2,
                  o_ref, *, inv_hw):
    # s_ref, d_ref: (C, HW); o_ref: (2, C, HW)
    s = s_ref[...]
    d = d_ref[...]
    gs = jnp.sum(s.astype(jnp.float32), axis=-1, keepdims=True) * inv_hw  # (C,1)
    gd = jnp.sum(d.astype(jnp.float32), axis=-1, keepdims=True) * inv_hw
    attn_l, attn_r = _attention_from_gap(gs, gd, wl1, bl1, wr1, br1,
                                         wl2, bl2, wr2, br2)
    o_ref[0] = (s * attn_l.astype(s.dtype)).astype(o_ref.dtype)
    o_ref[1] = (d * attn_r.astype(d.dtype)).astype(o_ref.dtype)


# ----------------------------------------------------------------------------
# Fallback stage 1: HW-tiled GAP (f32 accumulation, keepdims) + MLP epilogue.
# Grid = (B, n_hw), batch parallel / reduction arbitrary-last.
# ----------------------------------------------------------------------------
def _gap_mlp_kernel(s_ref, d_ref,
                    wl1, bl1, wr1, br1, wl2, bl2, wr2, br2,
                    attn_l_ref, attn_r_ref,
                    acc_s_ref, acc_d_ref, *, inv_hw):
    h = pl.program_id(1)

    @pl.when(h == 0)
    def _():
        acc_s_ref[...] = jnp.zeros_like(acc_s_ref)
        acc_d_ref[...] = jnp.zeros_like(acc_d_ref)

    # keepdims keeps C on sublanes -> no per-step cross-layout move.
    acc_s_ref[...] += jnp.sum(s_ref[...].astype(jnp.float32), axis=-1,
                              keepdims=True)
    acc_d_ref[...] += jnp.sum(d_ref[...].astype(jnp.float32), axis=-1,
                              keepdims=True)

    @pl.when(h == pl.num_programs(1) - 1)
    def _():
        gs = acc_s_ref[...] * inv_hw          # (C, 1) mean over HW
        gd = acc_d_ref[...] * inv_hw
        attn_l, attn_r = _attention_from_gap(gs, gd, wl1, bl1, wr1, br1,
                                             wl2, bl2, wr2, br2)
        attn_l_ref[...] = attn_l.astype(attn_l_ref.dtype)
        attn_r_ref[...] = attn_r.astype(attn_r_ref.dtype)


# ----------------------------------------------------------------------------
# Fallback stage 2: channel rescale + concat via sublane-aligned (2, C, t) out.
# ----------------------------------------------------------------------------
def _scale_kernel(s_ref, d_ref, al_ref, ar_ref, o_ref):
    # s_ref, d_ref: (C, t_hw); al_ref, ar_ref: (C, 1); o_ref: (2, C, t_hw)
    o_ref[0] = (s_ref[...] * al_ref[...]).astype(o_ref.dtype)
    o_ref[1] = (d_ref[...] * ar_ref[...]).astype(o_ref.dtype)


# ----------------------------------------------------------------------------
# Wrapper
# ----------------------------------------------------------------------------
def dpcca_forward(S, D, params, *, force_two_stage=False, vmem_budget_bytes=None):
    B, C, H, W = S.shape
    HW = H * W
    dtype = S.dtype
    esize = jnp.dtype(dtype).itemsize
    budget, vmem_limit = _vmem_budget_and_limit(vmem_budget_bytes)

    s3 = S.reshape(B, C, HW)
    d3 = D.reshape(B, C, HW)

    # weights PyTorch-native (out, in); biases reshaped to (out, 1) columns.
    weights = (params["wl1"], params["bl1"].reshape(-1, 1),
               params["wr1"], params["br1"].reshape(-1, 1),
               params["wl2"], params["bl2"].reshape(-1, 1),
               params["wr2"], params["br2"].reshape(-1, 1))
    weight_specs = [_full_spec(w) for w in weights]
    weight_bytes = int(sum(np.prod(w.shape) for w in weights)) * 4

    # -------- fused single-pass path (S, D read from HBM exactly once) --------
    # per-block footprint: S,D double-buffered + (2,C,HW) output double-buffered
    fused_bytes = (8 * C * HW * esize) + 2 * weight_bytes + (1 << 20)
    if (not force_two_stage) and fused_bytes <= budget:
        out = pl.pallas_call(
            functools.partial(_fused_kernel, inv_hw=1.0 / HW),
            grid=(B,),
            in_specs=[pl.BlockSpec((None, C, HW), lambda b: (b, 0, 0)),
                      pl.BlockSpec((None, C, HW), lambda b: (b, 0, 0))]
                     + weight_specs,
            out_specs=pl.BlockSpec((None, 2, C, HW), lambda b: (b, 0, 0, 0)),
            out_shape=jax.ShapeDtypeStruct((B, 2, C, HW), dtype),
            compiler_params=pltpu.CompilerParams(
                dimension_semantics=("parallel",),
                vmem_limit_bytes=vmem_limit),
        )(s3, d3, *weights)
        return out.reshape(B, 2 * C, H, W)

    # -------------------- two-stage fallback (large HW) --------------------
    # TODO(synk): for very thin channels (C < 8) a (B*C, HW) flattening of
    # stage 1 would improve sublane utilization; skipped for realistic C.

    # stage 1: 2 streams x 2 pipeline buffers x C rows per HW lane.
    t1 = _pick_hw_tile(HW, bytes_per_lane=4 * C * esize,
                       budget_bytes=max(budget - 2 * weight_bytes - (1 << 20),
                                        1 << 16))
    n1 = HW // t1

    attn_l, attn_r = pl.pallas_call(
        functools.partial(_gap_mlp_kernel, inv_hw=1.0 / HW),
        grid=(B, n1),
        in_specs=[pl.BlockSpec((None, C, t1), lambda b, h: (b, 0, h)),
                  pl.BlockSpec((None, C, t1), lambda b, h: (b, 0, h))]
                 + weight_specs,
        out_specs=(pl.BlockSpec((None, C, 1), lambda b, h: (b, 0, 0)),
                   pl.BlockSpec((None, C, 1), lambda b, h: (b, 0, 0))),
        out_shape=(jax.ShapeDtypeStruct((B, C, 1), dtype),
                   jax.ShapeDtypeStruct((B, C, 1), dtype)),
        scratch_shapes=[pltpu.VMEM((C, 1), jnp.float32),
                        pltpu.VMEM((C, 1), jnp.float32)],
        compiler_params=pltpu.CompilerParams(
            dimension_semantics=("parallel", "arbitrary"),
            vmem_limit_bytes=vmem_limit),
    )(s3, d3, *weights)

    # stage 2: (S + D + 2C output) x 2 pipeline buffers per HW lane.
    t2 = _pick_hw_tile(HW, bytes_per_lane=8 * C * esize,
                       budget_bytes=max(budget - (1 << 20), 1 << 16))
    n2 = HW // t2

    out = pl.pallas_call(
        _scale_kernel,
        grid=(B, n2),
        in_specs=[pl.BlockSpec((None, C, t2), lambda b, h: (b, 0, h)),
                  pl.BlockSpec((None, C, t2), lambda b, h: (b, 0, h)),
                  pl.BlockSpec((None, C, 1), lambda b, h: (b, 0, 0)),
                  pl.BlockSpec((None, C, 1), lambda b, h: (b, 0, 0))],
        out_specs=pl.BlockSpec((None, 2, C, t2), lambda b, h: (b, 0, 0, h)),
        out_shape=jax.ShapeDtypeStruct((B, 2, C, HW), dtype),
        compiler_params=pltpu.CompilerParams(
            dimension_semantics=("parallel", "parallel"),
            vmem_limit_bytes=vmem_limit),
    )(s3, d3, attn_l, attn_r)

    return out.reshape(B, 2 * C, H, W)


# ----------------------------------------------------------------------------
# Deterministic parameter init (PyTorch Linear default U(-1/sqrt(fan_in), ...)).
# Weights stored PyTorch-native as (out_features, in_features); bias (out,).
# ----------------------------------------------------------------------------
def init_params(key, channels, ratio=2):
    cr = channels // ratio
    keys = jax.random.split(key, 8)

    def lin(kw, kb, fan_in, fan_out):
        bound = 1.0 / np.sqrt(fan_in)
        w = jax.random.uniform(kw, (fan_out, fan_in), jnp.float32, -bound, bound)
        b = jax.random.uniform(kb, (fan_out,), jnp.float32, -bound, bound)
        return w, b

    wl1, bl1 = lin(keys[0], keys[1], channels, cr)
    wr1, br1 = lin(keys[2], keys[3], channels, cr)
    wl2, bl2 = lin(keys[4], keys[5], cr, channels)
    wr2, br2 = lin(keys[6], keys[7], cr, channels)
    return dict(wl1=wl1, bl1=bl1, wr1=wr1, br1=br1,
                wl2=wl2, bl2=bl2, wr2=wr2, br2=br2)


# Pure-JAX reference for correctness checking.
def dpcca_ref(S, D, p):
    gs = S.mean(axis=(2, 3))
    gd = D.mean(axis=(2, 3))
    left = jax.nn.relu((gs + gd) @ p["wl1"].T + p["bl1"])
    right = jax.nn.relu(gd @ p["wr1"].T + p["br1"])
    fusion = left + right
    al = jax.nn.sigmoid(fusion @ p["wl2"].T + p["bl2"])[:, :, None, None]
    ar = jax.nn.sigmoid(fusion @ p["wr2"].T + p["br2"])[:, :, None, None]
    return jnp.concatenate([S * al, D * ar], axis=1)


if __name__ == "__main__":
    B, C, H, W = 2, 4, 16, 16   # channels=4, ratio=2
    key = jax.random.PRNGKey(0)
    k_s, k_d, k_p = jax.random.split(key, 3)

    S = jax.random.normal(k_s, (B, C, H, W), jnp.float32)
    D = jax.random.normal(k_d, (B, C, H, W), jnp.float32)
    params = init_params(k_p, C, ratio=2)

    ref = jax.block_until_ready(dpcca_ref(S, D, params))

    # Fused single-pass path (small shapes comfortably fit VMEM).
    out_fused = jax.block_until_ready(dpcca_forward(S, D, params))
    assert out_fused.shape == (B, 2 * C, H, W), out_fused.shape
    np.testing.assert_allclose(np.asarray(out_fused), np.asarray(ref),
                               rtol=1e-5, atol=1e-5)

    # Two-stage fallback path, forced with a tiny budget so HW tiling
    # (multi-step GAP accumulation) is exercised too.
    out_split = jax.block_until_ready(
        dpcca_forward(S, D, params, force_two_stage=True,
                      vmem_budget_bytes=1 << 20))
    np.testing.assert_allclose(np.asarray(out_split), np.asarray(ref),
                               rtol=1e-5, atol=1e-5)

    print("KERNEL_OK")
</pallas_src>

<mosaic_0001>
module attributes {stable_mosaic.version = 11 : i64} {
  func.func @_fused_kernel(%arg0: i32, %arg1: memref<1x4x256xf32, #tpu.memory_space<vmem>>, %arg2: memref<1x4x256xf32, #tpu.memory_space<vmem>>, %arg3: memref<2x4xf32, #tpu.memory_space<vmem>>, %arg4: memref<2x1xf32, #tpu.memory_space<vmem>>, %arg5: memref<2x4xf32, #tpu.memory_space<vmem>>, %arg6: memref<2x1xf32, #tpu.memory_space<vmem>>, %arg7: memref<4x2xf32, #tpu.memory_space<vmem>>, %arg8: memref<4x1xf32, #tpu.memory_space<vmem>>, %arg9: memref<4x2xf32, #tpu.memory_space<vmem>>, %arg10: memref<4x1xf32, #tpu.memory_space<vmem>>, %arg11: memref<1x2x4x256xf32, #tpu.memory_space<vmem>>) attributes {dimension_semantics = [#tpu.dimension_semantics<parallel>], iteration_bounds = array<i64: 2>, scalar_prefetch = 0 : i64, scratch_operands = 0 : i64, tpu.core_type = #tpu.core_type<tc>, window_params = [{transform_indices = @transform_0, window_bounds = array<i64: 1, 4, 256>}, {transform_indices = @transform_1, window_bounds = array<i64: 1, 4, 256>}, {pipeline_mode = #tpu.pipeline_mode<synchronous>, transform_indices = @transform_2, window_bounds = array<i64: 2, 4>}, {pipeline_mode = #tpu.pipeline_mode<synchronous>, transform_indices = @transform_3, window_bounds = array<i64: 2, 1>}, {pipeline_mode = #tpu.pipeline_mode<synchronous>, transform_indices = @transform_4, window_bounds = array<i64: 2, 4>}, {pipeline_mode = #tpu.pipeline_mode<synchronous>, transform_indices = @transform_5, window_bounds = array<i64: 2, 1>}, {pipeline_mode = #tpu.pipeline_mode<synchronous>, transform_indices = @transform_6, window_bounds = array<i64: 4, 2>}, {pipeline_mode = #tpu.pipeline_mode<synchronous>, transform_indices = @transform_7, window_bounds = array<i64: 4, 1>}, {pipeline_mode = #tpu.pipeline_mode<synchronous>, transform_indices = @transform_8, window_bounds = array<i64: 4, 2>}, {pipeline_mode = #tpu.pipeline_mode<synchronous>, transform_indices = @transform_9, window_bounds = array<i64: 4, 1>}, {transform_indices = @transform_10, window_bounds = array<i64: 1, 2, 4, 256>}]} {
    %c0 = arith.constant 0 : index
    %c0_0 = arith.constant 0 : index
    %c0_1 = arith.constant 0 : index
    %0 = vector.load %arg1[%c0, %c0_0, %c0_1] : memref<1x4x256xf32, #tpu.memory_space<vmem>>, vector<1x4x256xf32>
    %1 = vector.shape_cast %0 : vector<1x4x256xf32> to vector<4x256xf32>
    %c0_2 = arith.constant 0 : index
    %c0_3 = arith.constant 0 : index
    %c0_4 = arith.constant 0 : index
    %2 = vector.load %arg2[%c0_2, %c0_3, %c0_4] : memref<1x4x256xf32, #tpu.memory_space<vmem>>, vector<1x4x256xf32>
    %3 = vector.shape_cast %2 : vector<1x4x256xf32> to vector<4x256xf32>
    %cst = arith.constant dense<0.000000e+00> : vector<4xf32>
    %4 = vector.multi_reduction <add>, %1, %cst [1] : vector<4x256xf32> to vector<4xf32>
    %5 = vector.shape_cast %4 : vector<4xf32> to vector<4x1xf32>
    %cst_5 = arith.constant 3.906250e-03 : f32
    %6 = vector.broadcast %cst_5 : f32 to vector<4x1xf32>
    %7 = arith.mulf %5, %6 : vector<4x1xf32>
    %cst_6 = arith.constant dense<0.000000e+00> : vector<4xf32>
    %8 = vector.multi_reduction <add>, %3, %cst_6 [1] : vector<4x256xf32> to vector<4xf32>
    %9 = vector.shape_cast %8 : vector<4xf32> to vector<4x1xf32>
    %cst_7 = arith.constant 3.906250e-03 : f32
    %10 = vector.broadcast %cst_7 : f32 to vector<4x1xf32>
    %11 = arith.mulf %9, %10 : vector<4x1xf32>
    %c0_8 = arith.constant 0 : index
    %c0_9 = arith.constant 0 : index
    %12 = vector.load %arg3[%c0_8, %c0_9] : memref<2x4xf32, #tpu.memory_space<vmem>>, vector<2x4xf32>
    %13 = arith.addf %7, %11 : vector<4x1xf32>
    %cst_10 = arith.constant dense<0.000000e+00> : vector<2x1xf32>
    %14 = tpu.matmul %12, %13, %cst_10 {dimension_numbers = #tpu.dot_dimension_numbers<[1], [0], [0], [1], [0, 0, 1, 1], [], []>} : vector<2x4xf32>, vector<4x1xf32>, vector<2x1xf32> -> vector<2x1xf32>
    %c0_11 = arith.constant 0 : index
    %c0_12 = arith.constant 0 : index
    %15 = vector.load %arg4[%c0_11, %c0_12] : memref<2x1xf32, #tpu.memory_space<vmem>>, vector<2x1xf32>
    %16 = arith.addf %14, %15 : vector<2x1xf32>
    %cst_13 = arith.constant 0.000000e+00 : f32
    %17 = vector.broadcast %cst_13 : f32 to vector<2x1xf32>
    %18 = arith.maximumf %16, %17 : vector<2x1xf32>
    %c0_14 = arith.constant 0 : index
    %c0_15 = arith.constant 0 : index
    %19 = vector.load %arg5[%c0_14, %c0_15] : memref<2x4xf32, #tpu.memory_space<vmem>>, vector<2x4xf32>
    %cst_16 = arith.constant dense<0.000000e+00> : vector<2x1xf32>
    %20 = tpu.matmul %19, %11, %cst_16 {dimension_numbers = #tpu.dot_dimension_numbers<[1], [0], [0], [1], [0, 0, 1, 1], [], []>} : vector<2x4xf32>, vector<4x1xf32>, vector<2x1xf32> -> vector<2x1xf32>
    %c0_17 = arith.constant 0 : index
    %c0_18 = arith.constant 0 : index
    %21 = vector.load %arg6[%c0_17, %c0_18] : memref<2x1xf32, #tpu.memory_space<vmem>>, vector<2x1xf32>
    %22 = arith.addf %20, %21 : vector<2x1xf32>
    %cst_19 = arith.constant 0.000000e+00 : f32
    %23 = vector.broadcast %cst_19 : f32 to vector<2x1xf32>
    %24 = arith.maximumf %22, %23 : vector<2x1xf32>
    %25 = arith.addf %18, %24 : vector<2x1xf32>
    %c0_20 = arith.constant 0 : index
    %c0_21 = arith.constant 0 : index
    %26 = vector.load %arg7[%c0_20, %c0_21] : memref<4x2xf32, #tpu.memory_space<vmem>>, vector<4x2xf32>
    %cst_22 = arith.constant dense<0.000000e+00> : vector<4x1xf32>
    %27 = tpu.matmul %26, %25, %cst_22 {dimension_numbers = #tpu.dot_dimension_numbers<[1], [0], [0], [1], [0, 0, 1, 1], [], []>} : vector<4x2xf32>, vector<2x1xf32>, vector<4x1xf32> -> vector<4x1xf32>
    %c0_23 = arith.constant 0 : index
    %c0_24 = arith.constant 0 : index
    %28 = vector.load %arg8[%c0_23, %c0_24] : memref<4x1xf32, #tpu.memory_space<vmem>>, vector<4x1xf32>
    %29 = arith.addf %27, %28 : vector<4x1xf32>
    %30 = arith.negf %29 : vector<4x1xf32>
    %31 = math.exp %30 : vector<4x1xf32>
    %cst_25 = arith.constant 1.000000e+00 : f32
    %32 = vector.broadcast %cst_25 : f32 to vector<4x1xf32>
    %33 = arith.addf %32, %31 : vector<4x1xf32>
    %34 = arith.divf %32, %33 : vector<4x1xf32>
    %c0_26 = arith.constant 0 : index
    %c0_27 = arith.constant 0 : index
    %35 = vector.load %arg9[%c0_26, %c0_27] : memref<4x2xf32, #tpu.memory_space<vmem>>, vector<4x2xf32>
    %cst_28 = arith.constant dense<0.000000e+00> : vector<4x1xf32>
    %36 = tpu.matmul %35, %25, %cst_28 {dimension_numbers = #tpu.dot_dimension_numbers<[1], [0], [0], [1], [0, 0, 1, 1], [], []>} : vector<4x2xf32>, vector<2x1xf32>, vector<4x1xf32> -> vector<4x1xf32>
    %c0_29 = arith.constant 0 : index
    %c0_30 = arith.constant 0 : index
    %37 = vector.load %arg10[%c0_29, %c0_30] : memref<4x1xf32, #tpu.memory_space<vmem>>, vector<4x1xf32>
    %38 = arith.addf %36, %37 : vector<4x1xf32>
    %39 = arith.negf %38 : vector<4x1xf32>
    %40 = math.exp %39 : vector<4x1xf32>
    %cst_31 = arith.constant 1.000000e+00 : f32
    %41 = vector.broadcast %cst_31 : f32 to vector<4x1xf32>
    %42 = arith.addf %41, %40 : vector<4x1xf32>
    %43 = arith.divf %41, %42 : vector<4x1xf32>
    %44 = vector.broadcast %34 : vector<4x1xf32> to vector<4x256xf32>
    %45 = arith.mulf %1, %44 : vector<4x256xf32>
    %c0_32 = arith.constant 0 : index
    %c0_33 = arith.constant 0 : index
    %c0_34 = arith.constant 0 : index
    %c0_35 = arith.constant 0 : index
    %46 = vector.load %arg11[%c0_32, %c0_33, %c0_34, %c0_35] : memref<1x2x4x256xf32, #tpu.memory_space<vmem>>, vector<1x1x4x256xf32>
    %47 = vector.shape_cast %46 : vector<1x1x4x256xf32> to vector<4x256xf32>
    %48 = vector.shape_cast %45 : vector<4x256xf32> to vector<1x1x4x256xf32>
    tpu.vector_store %arg11[%c0_32, %c0_33, %c0_34, %c0_35], %48 {strides = array<i32>} : memref<1x2x4x256xf32, #tpu.memory_space<vmem>>, vector<1x1x4x256xf32>,
    %49 = vector.broadcast %43 : vector<4x1xf32> to vector<4x256xf32>
    %50 = arith.mulf %3, %49 : vector<4x256xf32>
    %c0_36 = arith.constant 0 : index
    %c1 = arith.constant 1 : index
    %c0_37 = arith.constant 0 : index
    %c0_38 = arith.constant 0 : index
    %51 = vector.load %arg11[%c0_36, %c1, %c0_37, %c0_38] : memref<1x2x4x256xf32, #tpu.memory_space<vmem>>, vector<1x1x4x256xf32>
    %52 = vector.shape_cast %51 : vector<1x1x4x256xf32> to vector<4x256xf32>
    %53 = vector.shape_cast %50 : vector<4x256xf32> to vector<1x1x4x256xf32>
    tpu.vector_store %arg11[%c0_36, %c1, %c0_37, %c0_38], %53 {strides = array<i32>} : memref<1x2x4x256xf32, #tpu.memory_space<vmem>>, vector<1x1x4x256xf32>,
    return
  }
  func.func @transform_0(%arg0: i32) -> (i32, i32, i32) {
    %c0_i32 = arith.constant 0 : i32
    %c0_i32_0 = arith.constant 0 : i32
    %c0_i32_1 = arith.constant 0 : i32
    return %arg0, %c0_i32, %c0_i32_0 : i32, i32, i32
  }
  func.func @transform_1(%arg0: i32) -> (i32, i32, i32) {
    %c0_i32 = arith.constant 0 : i32
    %c0_i32_0 = arith.constant 0 : i32
    %c0_i32_1 = arith.constant 0 : i32
    return %arg0, %c0_i32, %c0_i32_0 : i32, i32, i32
  }
  func.func @transform_2(%arg0: i32) -> (i32, i32) {
    %c0_i32 = arith.constant 0 : i32
    %c0_i32_0 = arith.constant 0 : i32
    %c0_i32_1 = arith.constant 0 : i32
    return %c0_i32, %c0_i32_0 : i32, i32
  }
  func.func @transform_3(%arg0: i32) -> (i32, i32) {
    %c0_i32 = arith.constant 0 : i32
    %c0_i32_0 = arith.constant 0 : i32
    %c0_i32_1 = arith.constant 0 : i32
    return %c0_i32, %c0_i32_0 : i32, i32
  }
  func.func @transform_4(%arg0: i32) -> (i32, i32) {
    %c0_i32 = arith.constant 0 : i32
    %c0_i32_0 = arith.constant 0 : i32
    %c0_i32_1 = arith.constant 0 : i32
    return %c0_i32, %c0_i32_0 : i32, i32
  }
  func.func @transform_5(%arg0: i32) -> (i32, i32) {
    %c0_i32 = arith.constant 0 : i32
    %c0_i32_0 = arith.constant 0 : i32
    %c0_i32_1 = arith.constant 0 : i32
    return %c0_i32, %c0_i32_0 : i32, i32
  }
  func.func @transform_6(%arg0: i32) -> (i32, i32) {
    %c0_i32 = arith.constant 0 : i32
    %c0_i32_0 = arith.constant 0 : i32
    %c0_i32_1 = arith.constant 0 : i32
    return %c0_i32, %c0_i32_0 : i32, i32
  }
  func.func @transform_7(%arg0: i32) -> (i32, i32) {
    %c0_i32 = arith.constant 0 : i32
    %c0_i32_0 = arith.constant 0 : i32
    %c0_i32_1 = arith.constant 0 : i32
    return %c0_i32, %c0_i32_0 : i32, i32
  }
  func.func @transform_8(%arg0: i32) -> (i32, i32) {
    %c0_i32 = arith.constant 0 : i32
    %c0_i32_0 = arith.constant 0 : i32
    %c0_i32_1 = arith.constant 0 : i32
    return %c0_i32, %c0_i32_0 : i32, i32
  }
  func.func @transform_9(%arg0: i32) -> (i32, i32) {
    %c0_i32 = arith.constant 0 : i32
    %c0_i32_0 = arith.constant 0 : i32
    %c0_i32_1 = arith.constant 0 : i32
    return %c0_i32, %c0_i32_0 : i32, i32
  }
  func.func @transform_10(%arg0: i32) -> (i32, i32, i32, i32) {
    %c0_i32 = arith.constant 0 : i32
    %c0_i32_0 = arith.constant 0 : i32
    %c0_i32_1 = arith.constant 0 : i32
    %c0_i32_2 = arith.constant 0 : i32
    return %arg0, %c0_i32, %c0_i32_0, %c0_i32_1 : i32, i32, i32, i32
  }
}

</mosaic_0001>

<llo_original>
// kernel: tpu_custom_call.1
$region0: #{tpu_custom_call.1}
  #allocation0 [shape = 'u32[]', space=smem, size = 0x4, offset = 0x4, fixed_abs, tag = 'smem constant byte address 0x4 - core index']
  #allocation1 [shape = 'u32[72,128]{1,0:T(1,128)}', space=vmem, size = 0x9000, scoped, tag = 'internal scratch']
  %s0 = inlined_call_operand.hbm [shape: f32[2,4,256], index: 0, kind: input, shape index: {}]
  %s1 = inlined_call_operand.hbm [shape: f32[2,4,256], index: 1, kind: input, shape index: {}]
  %s2 = inlined_call_operand.vmem [shape: f32[2,4], index: 2, kind: input, shape index: {}]
  %s3 = inlined_call_operand.vmem [shape: f32[2,1], index: 3, kind: input, shape index: {}]
  %s4 = inlined_call_operand.vmem [shape: f32[2,4], index: 4, kind: input, shape index: {}]
  %s5 = inlined_call_operand.vmem [shape: f32[2,1], index: 5, kind: input, shape index: {}]
  %s6 = inlined_call_operand.vmem [shape: f32[4,2], index: 6, kind: input, shape index: {}]
  %s7 = inlined_call_operand.vmem [shape: f32[4,1], index: 7, kind: input, shape index: {}]
  %s8 = inlined_call_operand.vmem [shape: f32[4,2], index: 8, kind: input, shape index: {}]
  %s9 = inlined_call_operand.vmem [shape: f32[4,1], index: 9, kind: input, shape index: {}]
  %s10 = inlined_call_operand.hbm [shape: f32[2,2,4,256], index: 10, kind: output, shape index: {}]
  %s11 = sld [smem:[#allocation0]]
  $region81: #{tpu_custom_call.1} parent=0
    _
  %s13 = ssub.s32 1, %s11
  %s14 = scalar_select 0, %s13, %s11
  $region1: #{tpu_custom_call.1} parent=0
    #allocation2 [shape = 'u8[8192]{0}', space=vmem, size = 0x2000, scoped, tag = 'input window, operand 0']
    #allocation3 [shape = 's32[2]{0}', space=sflag, size = 0x8, scoped, tag = 'scoped memory for tpu_custom_call.1']
    #allocation4 [shape = 's32[2]{0}', space=sflag, size = 0x8, scoped, tag = 'scoped memory for tpu_custom_call.1']
    #allocation5 [shape = 'u8[8192]{0}', space=vmem, size = 0x2000, scoped, tag = 'input window, operand 1']
    #allocation6 [shape = 's32[2]{0}', space=sflag, size = 0x8, scoped, tag = 'scoped memory for tpu_custom_call.1']
    #allocation7 [shape = 'u8[16384]{0}', space=vmem, size = 0x4000, scoped, tag = 'output window, operand 0']
    %15 = vsyncpa [#allocation3], 0
    %s16 = scalar_lea.sflag [#allocation3], 1
    %17 = vsyncpa %s16, 0
    %18 = vsyncpa [#allocation6], 0
    %s19 = scalar_lea.sflag [#allocation6], 1
    %20 = vsyncpa %s19, 0
    %21 = vsyncpa [#allocation4], 0
    %s22 = scalar_lea.sflag [#allocation4], 1
    %23 = vsyncpa %s22, 0
    loop: start=0, step=1, limit=4
    $region2: #{tpu_custom_call.1} parent=1 // loop_pre_header
      _
    $region3: #{tpu_custom_call.1} parent=1 // loop_header
      %s25 = sphi 0, %s29
      %p26 = scmp.ge.s32.totalorder %s25, 4
      %s35 = sphi 0, %s37
      %s38 = sphi 0, %s35
      %s39 = sphi 0, %s38
      %s55 = sphi 0, %s39
      %s61 = sphi 0, %s63
      %s64 = sphi 0, %s61
      %s65 = sphi 0, %s64
      %s81 = sphi 0, %s65
      %s85 = sphi 0, %s85
      %s87 = sphi 0, %s85
      %s88 = sphi 0, %s87
      %s102 = sphi 0, %s88
      %s106 = sphi 0, %s106
      %s108 = sphi 0, %s106
      %s109 = sphi 0, %s108
      %s123 = sphi 0, %s109
      %s127 = sphi 0, %s127
      %s129 = sphi 0, %s127
      %s130 = sphi 0, %s129
      %s144 = sphi 0, %s130
      %s148 = sphi 0, %s148
      %s150 = sphi 0, %s148
      %s151 = sphi 0, %s150
      %s165 = sphi 0, %s151
      %s169 = sphi 0, %s169
      %s171 = sphi 0, %s169
      %s172 = sphi 0, %s171
      %s186 = sphi 0, %s172
      %s190 = sphi 0, %s190
      %s192 = sphi 0, %s190
      %s193 = sphi 0, %s192
      %s207 = sphi 0, %s193
      %s211 = sphi 0, %s211
      %s213 = sphi 0, %s211
      %s214 = sphi 0, %s213
      %s228 = sphi 0, %s214
      %s232 = sphi 0, %s232
      %s234 = sphi 0, %s232
      %s235 = sphi 0, %s234
      %s249 = sphi 0, %s235
      %s255 = sphi 0, %s257
      %s258 = sphi 0, %s255
      %s259 = sphi 0, %s258
      %s275 = sphi 0, %s259
    $region4: #{tpu_custom_call.1} parent=1 // loop_header_branch
      %28 = sbr.rel (%p26) target = $region8
    $region5: #{tpu_custom_call.1} parent=1 // loop_body
      %s30 = ssub.s32 %s25, 1
      %s31 = ssub.s32 %s25, 2
      %s32 = sadd.s32 %s25, 1
      %s33 = ssub.s32 %s25, %s32
      %p34 = scmp.eq.s32.totalorder %s33, 0
      %s36 = sadd.s32 %s35, 1
      %s37 = scalar_select %p34, %s35, %s36
      %p40 = pneg %p34
      %p41 = scmp.eq.s32.totalorder %s25, 1
      %p42 = por %p40, %p41
      %p43 = scmp.ne.s32.totalorder %s35, %s38
      %p44 = scmp.eq.s32.totalorder %s25, 0
      %p45 = por %p43, %p44
      %p46 = scmp.ne.s32.totalorder %s35, %s38
      %p47 = scmp.eq.s32.totalorder %s30, 1
      %p48 = por %p46, %p47
      %p49 = scmp.ne.s32.totalorder %s38, %s39
      %p50 = scmp.eq.s32.totalorder %s30, 0
      %p51 = por %p49, %p50
      %p52 = scmp.ne.s32.totalorder %s38, %s39
      %p53 = scmp.eq.s32.totalorder %s31, 1
      %p54 = por %p52, %p53
      %p56 = scmp.ne.s32.totalorder %s39, %s55
      %p57 = scmp.eq.s32.totalorder %s31, 0
      %p58 = por %p56, %p57
      %s59 = ssub.s32 %s25, %s32
      %p60 = scmp.eq.s32.totalorder %s59, 0
      %s62 = sadd.s32 %s61, 1
      %s63 = scalar_select %p60, %s61, %s62
      %p66 = pneg %p60
      %p67 = scmp.eq.s32.totalorder %s25, 1
      %p68 = por %p66, %p67
      %p69 = scmp.ne.s32.totalorder %s61, %s64
      %p70 = scmp.eq.s32.totalorder %s25, 0
      %p71 = por %p69, %p70
      %p72 = scmp.ne.s32.totalorder %s61, %s64
      %p73 = scmp.eq.s32.totalorder %s30, 1
      %p74 = por %p72, %p73
      %p75 = scmp.ne.s32.totalorder %s64, %s65
      %p76 = scmp.eq.s32.totalorder %s30, 0
      %p77 = por %p75, %p76
      %p78 = scmp.ne.s32.totalorder %s64, %s65
      %p79 = scmp.eq.s32.totalorder %s31, 1
      %p80 = por %p78, %p79
      %p82 = scmp.ne.s32.totalorder %s65, %s81
      %p83 = scmp.eq.s32.totalorder %s31, 0
      %p84 = por %p82, %p83
      %s86 = sadd.s32 %s85, 1
      %p89 = scmp.eq.s32.totalorder %s25, 1
      %p90 = scmp.ne.s32.totalorder %s85, %s87
      %p91 = scmp.eq.s32.totalorder %s25, 0
      %p92 = por %p90, %p91
      %p93 = scmp.ne.s32.totalorder %s85, %s87
      %p94 = scmp.eq.s32.totalorder %s30, 1
      %p95 = por %p93, %p94
      %p96 = scmp.ne.s32.totalorder %s87, %s88
      %p97 = scmp.eq.s32.totalorder %s30, 0
      %p98 = por %p96, %p97
      %p99 = scmp.ne.s32.totalorder %s87, %s88
      %p100 = scmp.eq.s32.totalorder %s31, 1
      %p101 = por %p99, %p100
      %p103 = scmp.ne.s32.totalorder %s88, %s102
      %p104 = scmp.eq.s32.totalorder %s31, 0
      %p105 = por %p103, %p104
      %s107 = sadd.s32 %s106, 1
      %p110 = scmp.eq.s32.totalorder %s25, 1
      %p111 = scmp.ne.s32.totalorder %s106, %s108
      %p112 = scmp.eq.s32.totalorder %s25, 0
      %p113 = por %p111, %p112
      %p114 = scmp.ne.s32.totalorder %s106, %s108
      %p115 = scmp.eq.s32.totalorder %s30, 1
      %p116 = por %p114, %p115
      %p117 = scmp.ne.s32.totalorder %s108, %s109
      %p118 = scmp.eq.s32.totalorder %s30, 0
      %p119 = por %p117, %p118
      %p120 = scmp.ne.s32.totalorder %s108, %s109
      %p121 = scmp.eq.s32.totalorder %s31, 1
      %p122 = por %p120, %p121
      %p124 = scmp.ne.s32.totalorder %s109, %s123
      %p125 = scmp.eq.s32.totalorder %s31, 0
      %p126 = por %p124, %p125
      %s128 = sadd.s32 %s127, 1
      %p131 = scmp.eq.s32.totalorder %s25, 1
      %p132 = scmp.ne.s32.totalorder %s127, %s129
      %p133 = scmp.eq.s32.totalorder %s25, 0
      %p134 = por %p132, %p133
      %p135 = scmp.ne.s32.totalorder %s127, %s129
      %p136 = scmp.eq.s32.totalorder %s30, 1
      %p137 = por %p135, %p136
      %p138 = scmp.ne.s32.totalorder %s129, %s130
      %p139 = scmp.eq.s32.totalorder %s30, 0
      %p140 = por %p138, %p139
      %p141 = scmp.ne.s32.totalorder %s129, %s130
      %p142 = scmp.eq.s32.totalorder %s31, 1
      %p143 = por %p141, %p142
      %p145 = scmp.ne.s32.totalorder %s130, %s144
      %p146 = scmp.eq.s32.totalorder %s31, 0
      %p147 = por %p145, %p146
      %s149 = sadd.s32 %s148, 1
      %p152 = scmp.eq.s32.totalorder %s25, 1
      %p153 = scmp.ne.s32.totalorder %s148, %s150
      %p154 = scmp.eq.s32.totalorder %s25, 0
      %p155 = por %p153, %p154
      %p156 = scmp.ne.s32.totalorder %s148, %s150
      %p157 = scmp.eq.s32.totalorder %s30, 1
      %p158 = por %p156, %p157
      %p159 = scmp.ne.s32.totalorder %s150, %s151
      %p160 = scmp.eq.s32.totalorder %s30, 0
      %p161 = por %p159, %p160
      %p162 = scmp.ne.s32.totalorder %s150, %s151
      %p163 = scmp.eq.s32.totalorder %s31, 1
      %p164 = por %p162, %p163
      %p166 = scmp.ne.s32.totalorder %s151, %s165
      %p167 = scmp.eq.s32.totalorder %s31, 0
      %p168 = por %p166, %p167
      %s170 = sadd.s32 %s169, 1
      %p173 = scmp.eq.s32.totalorder %s25, 1
      %p174 = scmp.ne.s32.totalorder %s169, %s171
      %p175 = scmp.eq.s32.totalorder %s25, 0
      %p176 = por %p174, %p175
      %p177 = scmp.ne.s32.totalorder %s169, %s171
      %p178 = scmp.eq.s32.totalorder %s30, 1
      %p179 = por %p177, %p178
      %p180 = scmp.ne.s32.totalorder %s171, %s172
      %p181 = scmp.eq.s32.totalorder %s30, 0
      %p182 = por %p180, %p181
      %p183 = scmp.ne.s32.totalorder %s171, %s172
      %p184 = scmp.eq.s32.totalorder %s31, 1
      %p185 = por %p183, %p184
      %p187 = scmp.ne.s32.totalorder %s172, %s186
      %p188 = scmp.eq.s32.totalorder %s31, 0
      %p189 = por %p187, %p188
      %s191 = sadd.s32 %s190, 1
      %p194 = scmp.eq.s32.totalorder %s25, 1
      %p195 = scmp.ne.s32.totalorder %s190, %s192
      %p196 = scmp.eq.s32.totalorder %s25, 0
      %p197 = por %p195, %p196
      %p198 = scmp.ne.s32.totalorder %s190, %s192
      %p199 = scmp.eq.s32.totalorder %s30, 1
      %p200 = por %p198, %p199
      %p201 = scmp.ne.s32.totalorder %s192, %s193
      %p202 = scmp.eq.s32.totalorder %s30, 0
      %p203 = por %p201, %p202
      %p204 = scmp.ne.s32.totalorder %s192, %s193
      %p205 = scmp.eq.s32.totalorder %s31, 1
      %p206 = por %p204, %p205
      %p208 = scmp.ne.s32.totalorder %s193, %s207
      %p209 = scmp.eq.s32.totalorder %s31, 0
      %p210 = por %p208, %p209
      %s212 = sadd.s32 %s211, 1
      %p215 = scmp.eq.s32.totalorder %s25, 1
      %p216 = scmp.ne.s32.totalorder %s211, %s213
      %p217 = scmp.eq.s32.totalorder %s25, 0
      %p218 = por %p216, %p217
      %p219 = scmp.ne.s32.totalorder %s211, %s213
      %p220 = scmp.eq.s32.totalorder %s30, 1
      %p221 = por %p219, %p220
      %p222 = scmp.ne.s32.totalorder %s213, %s214
      %p223 = scmp.eq.s32.totalorder %s30, 0
      %p224 = por %p222, %p223
      %p225 = scmp.ne.s32.totalorder %s213, %s214
      %p226 = scmp.eq.s32.totalorder %s31, 1
      %p227 = por %p225, %p226
      %p229 = scmp.ne.s32.totalorder %s214, %s228
      %p230 = scmp.eq.s32.totalorder %s31, 0
      %p231 = por %p229, %p230
      %s233 = sadd.s32 %s232, 1
      %p236 = scmp.eq.s32.totalorder %s25, 1
      %p237 = scmp.ne.s32.totalorder %s232, %s234
      %p238 = scmp.eq.s32.totalorder %s25, 0
      %p239 = por %p237, %p238
      %p240 = scmp.ne.s32.totalorder %s232, %s234
      %p241 = scmp.eq.s32.totalorder %s30, 1
      %p242 = por %p240, %p241
      %p243 = scmp.ne.s32.totalorder %s234, %s235
      %p244 = scmp.eq.s32.totalorder %s30, 0
      %p245 = por %p243, %p244
      %p246 = scmp.ne.s32.totalorder %s234, %s235
      %p247 = scmp.eq.s32.totalorder %s31, 1
      %p248 = por %p246, %p247
      %p250 = scmp.ne.s32.totalorder %s235, %s249
      %p251 = scmp.eq.s32.totalorder %s31, 0
      %p252 = por %p250, %p251
      %s253 = ssub.s32 %s25, %s32
      %p254 = scmp.eq.s32.totalorder %s253, 0
      %s256 = sadd.s32 %s255, 1
      %s257 = scalar_select %p254, %s255, %s256
      %p260 = pneg %p254
      %p261 = scmp.eq.s32.totalorder %s25, 1
      %p262 = por %p260, %p261
      %p263 = scmp.ne.s32.totalorder %s255, %s258
      %p264 = scmp.eq.s32.totalorder %s25, 0
      %p265 = por %p263, %p264
      %p266 = scmp.ne.s32.totalorder %s255, %s258
      %p267 = scmp.eq.s32.totalorder %s30, 1
      %p268 = por %p266, %p267
      %p269 = scmp.ne.s32.totalorder %s258, %s259
      %p270 = scmp.eq.s32.totalorder %s30, 0
      %p271 = por %p269, %p270
      %p272 = scmp.ne.s32.totalorder %s258, %s259
      %p273 = scmp.eq.s32.totalorder %s31, 1
      %p274 = por %p272, %p273
      %p276 = scmp.ne.s32.totalorder %s259, %s275
      %p277 = scmp.eq.s32.totalorder %s31, 0
      %p278 = por %p276, %p277
      %p279 = scmp.le.s32.totalorder 1, %s25
      %p280 = scmp.lt.s32.totalorder %s25, 3
      %p281 = pnand %p279, %p280
      %p282 = pneg %p281
      // Predicated region
      $region9: #{tpu_custom_call.1} parent=5 // pred_check
        _
      $region10: #{tpu_custom_call.1} parent=5 // pred_check_branch
        %284 = sbr.rel (%p281) target = $region12
      $region11: #{tpu_custom_call.1} parent=5 // pred_region
        %s285 = ssub.s32 %s25, 1
        // Predicated region
        $region13: #{tpu_custom_call.1} parent=11 // pred_check
          %p286 = pneg %p98
        $region14: #{tpu_custom_call.1} parent=11 // pred_check_branch
          %288 = sbr.rel (%p286) target = $region16
        $region15: #{tpu_custom_call.1} parent=11 // pred_region
          _
        $region16: #{tpu_custom_call.1} parent=11 // pred_fallthru
          _
        // Predicated region
        $region17: #{tpu_custom_call.1} parent=11 // pred_check
          %p289 = pneg %p119
        $region18: #{tpu_custom_call.1} parent=11 // pred_check_branch
          %291 = sbr.rel (%p289) target = $region20
        $region19: #{tpu_custom_call.1} parent=11 // pred_region
          _
        $region20: #{tpu_custom_call.1} parent=11 // pred_fallthru
          _
        // Predicated region
        $region21: #{tpu_custom_call.1} parent=11 // pred_check
          %p292 = pneg %p140
        $region22: #{tpu_custom_call.1} parent=11 // pred_check_branch
          %294 = sbr.rel (%p292) target = $region24
        $region23: #{tpu_custom_call.1} parent=11 // pred_region
          _
        $region24: #{tpu_custom_call.1} parent=11 // pred_fallthru
          _
        // Predicated region
        $region25: #{tpu_custom_call.1} parent=11 // pred_check
          %p295 = pneg %p161
        $region26: #{tpu_custom_call.1} parent=11 // pred_check_branch
          %297 = sbr.rel (%p295) target = $region28
        $region27: #{tpu_custom_call.1} parent=11 // pred_region
          _
        $region28: #{tpu_custom_call.1} parent=11 // pred_fallthru
          _
        // Predicated region
        $region29: #{tpu_custom_call.1} parent=11 // pred_check
          %p298 = pneg %p182
        $region30: #{tpu_custom_call.1} parent=11 // pred_check_branch
          %300 = sbr.rel (%p298) target = $region32
        $region31: #{tpu_custom_call.1} parent=11 // pred_region
          _
        $region32: #{tpu_custom_call.1} parent=11 // pred_fallthru
          _
        // Predicated region
        $region33: #{tpu_custom_call.1} parent=11 // pred_check
          %p301 = pneg %p203
        $region34: #{tpu_custom_call.1} parent=11 // pred_check_branch
          %303 = sbr.rel (%p301) target = $region36
        $region35: #{tpu_custom_call.1} parent=11 // pred_region
          _
        $region36: #{tpu_custom_call.1} parent=11 // pred_fallthru
          _
        // Predicated region
        $region37: #{tpu_custom_call.1} parent=11 // pred_check
          %p304 = pneg %p224
        $region38: #{tpu_custom_call.1} parent=11 // pred_check_branch
          %306 = sbr.rel (%p304) target = $region40
        $region39: #{tpu_custom_call.1} parent=11 // pred_region
          _
        $region40: #{tpu_custom_call.1} parent=11 // pred_fallthru
          _
        // Predicated region
        $region41: #{tpu_custom_call.1} parent=11 // pred_check
          %p307 = pneg %p245
        $region42: #{tpu_custom_call.1} parent=11 // pred_check_branch
          %309 = sbr.rel (%p307) target = $region44
        $region43: #{tpu_custom_call.1} parent=11 // pred_region
          _
        $region44: #{tpu_custom_call.1} parent=11 // pred_fallthru
          _
      $region12: #{tpu_custom_call.1} parent=5 // pred_fallthru
        _
      %p310 = scmp.lt.s32.totalorder %s25, 2
      // Predicated region
      $region45: #{tpu_custom_call.1} parent=5 // pred_check
        %p311 = pneg %p310
      $region46: #{tpu_custom_call.1} parent=5 // pred_check_branch
        %313 = sbr.rel (%p311) target = $region48
      $region47: #{tpu_custom_call.1} parent=5 // pred_region
        // Predicated region
        $region49: #{tpu_custom_call.1} parent=47 // pred_check
          %p314 = pneg %p45
        $region50: #{tpu_custom_call.1} parent=47 // pred_check_branch
          %316 = sbr.rel (%p314) target = $region52
        $region51: #{tpu_custom_call.1} parent=47 // pred_region
          %s317 = sand.u32 %s35, 1
          %s318 = scalar_lea.sflag [#allocation3], %s317
          %s319 = sand.u32 %s35, 1
          %s320 = smul.addr %s319, 8
          %s321 = scalar_lea.vmem [#allocation2], %s320
          %323 = vsyncadd %s318, 0
          %s324 = smul.addr %s25, 2
          %s325 = smul.addr %s324, 4
          %s326 = scalar_lea.hbm %s0, %s325
          %s328 = sshll.u32 %s326, 4
          %s329 = int_to_ptr.hbm [resolvable:$true] %s328
          %s330 = sshll.u32 %s321, 4
          %s331 = int_to_ptr.vmem [resolvable:$true] %s330
          %333 = dma.hbm_to_vmem [thread:$0]  %s329, 128, %s331, %s318
        $region52: #{tpu_custom_call.1} parent=47 // pred_fallthru
          _
        // Predicated region
        $region53: #{tpu_custom_call.1} parent=47 // pred_check
          %p334 = pneg %p71
        $region54: #{tpu_custom_call.1} parent=47 // pred_check_branch
          %336 = sbr.rel (%p334) target = $region56
        $region55: #{tpu_custom_call.1} parent=47 // pred_region
          %s337 = sand.u32 %s61, 1
          %s338 = scalar_lea.sflag [#allocation6], %s337
          %s339 = sand.u32 %s61, 1
          %s340 = smul.addr %s339, 8
          %s341 = scalar_lea.vmem [#allocation5], %s340
          %343 = vsyncadd %s338, 0
          %s344 = smul.addr %s25, 2
          %s345 = smul.addr %s344, 4
          %s346 = scalar_lea.hbm %s1, %s345
          %s348 = sshll.u32 %s346, 4
          %s349 = int_to_ptr.hbm [resolvable:$true] %s348
          %s350 = sshll.u32 %s341, 4
          %s351 = int_to_ptr.vmem [resolvable:$true] %s350
          %353 = dma.hbm_to_vmem [thread:$0]  %s349, 128, %s351, %s338
        $region56: #{tpu_custom_call.1} parent=47 // pred_fallthru
          _
      $region48: #{tpu_custom_call.1} parent=5 // pred_fallthru
        _
      %p354 = scmp.le.s32.totalorder 1, %s25
      %p355 = scmp.lt.s32.totalorder %s25, 3
      %p356 = pnand %p354, %p355
      %p357 = pneg %p356
      // Predicated region
      $region57: #{tpu_custom_call.1} parent=5 // pred_check
        _
      $region58: #{tpu_custom_call.1} parent=5 // pred_check_branch
        %359 = sbr.rel (%p356) target = $region60
      $region59: #{tpu_custom_call.1} parent=5 // pred_region
        %s360 = ssub.s32 %s25, 1
        %s361 = sand.u32 %s38, 1
        %s362 = scalar_lea.sflag [#allocation3], %s361
        %s363 = sand.u32 %s38, 1
        %s364 = smul.addr %s363, 8
        %s365 = scalar_lea.vmem [#allocation2], %s364
        // Predicated region
        $region61: #{tpu_custom_call.1} parent=59 // pred_check
          %p366 = pneg %p51
        $region62: #{tpu_custom_call.1} parent=59 // pred_check_branch
          %368 = sbr.rel (%p366) target = $region64
        $region63: #{tpu_custom_call.1} parent=59 // pred_region
          %370 = dma.done %s362, 128
        $region64: #{tpu_custom_call.1} parent=59 // pred_fallthru
          _
        %s371 = sand.u32 %s64, 1
        %s372 = scalar_lea.sflag [#allocation6], %s371
        %s373 = sand.u32 %s64, 1
        %s374 = smul.addr %s373, 8
        %s375 = scalar_lea.vmem [#allocation5], %s374
        // Predicated region
        $region65: #{tpu_custom_call.1} parent=59 // pred_check
          %p376 = pneg %p77
        $region66: #{tpu_custom_call.1} parent=59 // pred_check_branch
          %378 = sbr.rel (%p376) target = $region68
        $region67: #{tpu_custom_call.1} parent=59 // pred_region
          %380 = dma.done %s372, 128
        $region68: #{tpu_custom_call.1} parent=59 // pred_fallthru
          _
        %s381 = sand.u32 %s38, 1
        %s382 = scalar_lea.sflag [#allocation3], %s381
        %s383 = sand.u32 %s38, 1
        %s384 = smul.addr %s383, 8
        %s385 = scalar_lea.vmem [#allocation2], %s384
        %p386 = pneg %p51
        %p387 = pneg %p48
        %s388 = sand.u32 %s64, 1
        %s389 = scalar_lea.sflag [#allocation6], %s388
        %s390 = sand.u32 %s64, 1
        %s391 = smul.addr %s390, 8
        %s392 = scalar_lea.vmem [#allocation5], %s391
        %p393 = pneg %p77
        %p394 = pneg %p74
        %p395 = pneg %p98
        %p396 = pneg %p95
        %p397 = pneg %p119
        %p398 = pneg %p116
        %p399 = pneg %p140
        %p400 = pneg %p137
        %p401 = pneg %p161
        %p402 = pneg %p158
        %p403 = pneg %p182
        %p404 = pneg %p179
        %p405 = pneg %p203
        %p406 = pneg %p200
        %p407 = pneg %p224
        %p408 = pneg %p221
        %p409 = pneg %p245
        %p410 = pneg %p242
        %p411 = pneg %p271
        %p412 = pneg %p268
        %s413 = sand.u32 %s258, 1
        %s414 = scalar_lea.sflag [#allocation4], %s413
        %s415 = sand.u32 %s258, 1
        %s416 = smul.addr %s415, 16
        %s417 = scalar_lea.vmem [#allocation7], %s416
        %v418 = vld [vmem:[%s365] sm:$0xff]
        %v419 = vld [vmem:[%s375] sm:$0xff]
        %421 = vst [vmem:[#allocation1] ss:$2 sm:$0xff] %v418
        %v422 = vld.sshfl [vmem:[#allocation1] sm:$0xff pattern:$0x75316420]
        %v423 = vld.sshfl [vmem:[#allocation1 + $0x8] sm:$0xff pattern:$0x75316420]
        %vm426 = vcmask 1043456
        %v427 = vsel %vm426, %v422, 0.0
        %v428 = vsel %vm426, %v423, 0.0
        %v429 = vadd.f32 %v427, %v428
        %430 = vadd.xlane.f32.xlu0 %v429
        %v431 = vpop.xlane.xlu0 %430
        %v432 = vmul.f32 %v431, 0.00390625
        %434 = vst [vmem:[#allocation1] ss:$2 sm:$0xff] %v419
        %v435 = vld.sshfl [vmem:[#allocation1] sm:$0xff pattern:$0x75316420]
        %v436 = vld.sshfl [vmem:[#allocation1 + $0x8] sm:$0xff pattern:$0x75316420]
        %v439 = vsel %vm426, %v435, 0.0
        %v440 = vsel %vm426, %v436, 0.0
        %v441 = vadd.f32 %v439, %v440
        %442 = vadd.xlane.f32.xlu0 %v441
        %v443 = vpop.xlane.xlu0 %442
        %v444 = vmul.f32 %v443, 0.00390625
        %v445 = vld [vmem:[%s2] sm:$0x3]
        %v446 = vadd.f32 %v432, %v444
        %v447 = vld [vmem:[%s3] sm:$0x3]
        %vm448 = vcmask 31744
        %v450 = vsel %vm448, %v445, 0
        %v453 = vsel %vm426, %v446, 0
        %455 = vmatpush.msra.mxu0 0.0
        %456 = vmatpush.msra.mxu0 0.0
        %457 = vmatpush.msra.mxu0 0.0
        %458 = vmatpush.msra.mxu0 0.0
        %459 = vmatpush.msra.mxu0 0.0
        %460 = vmatpush.msra.mxu0 0.0
        %461 = vmatpush.msra.mxu0 0.0
        %462 = vmatpush.msra.mxu0 0.0
        %463 = vmatpush.msra.mxu0 0.0
        %464 = vmatpush.msra.mxu0 0.0
        %465 = vmatpush.msra.mxu0 0.0
        %466 = vmatpush.msra.mxu0 0.0
        %467 = vmatpush.msra.mxu0 0.0
        %468 = vmatpush.msra.mxu0 0.0
        %469 = vmatpush.msra.mxu0 0.0
        %470 = vmatpush.msra.mxu0 %v453
        %471 = vmatmul.f32.gmra.mxu0 %v450
        %v472 = vpop.f32.mrf.mxu0
        %v473 = vadd.f32 %v447, %v472
        %474 = vdwg.mxu0
        %v475 = vmax.f32 %v473, 0.0
        %v476 = vld [vmem:[%s4] sm:$0x3]
        %v477 = vld [vmem:[%s5] sm:$0x3]
        %v479 = vsel %vm448, %v476, 0
        %v482 = vsel %vm426, %v444, 0
        %484 = vmatpush.msra.mxu0 0.0
        %485 = vmatpush.msra.mxu0 0.0
        %486 = vmatpush.msra.mxu0 0.0
        %487 = vmatpush.msra.mxu0 0.0
        %488 = vmatpush.msra.mxu0 0.0
        %489 = vmatpush.msra.mxu0 0.0
        %490 = vmatpush.msra.mxu0 0.0
        %491 = vmatpush.msra.mxu0 0.0
        %492 = vmatpush.msra.mxu0 0.0
        %493 = vmatpush.msra.mxu0 0.0
        %494 = vmatpush.msra.mxu0 0.0
        %495 = vmatpush.msra.mxu0 0.0
        %496 = vmatpush.msra.mxu0 0.0
        %497 = vmatpush.msra.mxu0 0.0
        %498 = vmatpush.msra.mxu0 0.0
        %499 = vmatpush.msra.mxu0 %v482
        %500 = vmatmul.f32.gmra.mxu0 %v479
        %v501 = vpop.f32.mrf.mxu0
        %v502 = vadd.f32 %v477, %v501
        %503 = vdwg.mxu0
        %v504 = vmax.f32 %v502, 0.0
        %v505 = vadd.f32 %v475, %v504
        %v506 = vld [vmem:[%s6] sm:$0xf]
        %v507 = vld [vmem:[%s7] sm:$0xf]
        %vm508 = vcmask 15360
        %v510 = vsel %vm508, %v506, 0
        %vm512 = vcmask 1041408
        %v514 = vsel %vm512, %v505, 0
        %516 = vmatpush.msra.mxu0 0.0
        %517 = vmatpush.msra.mxu0 0.0
        %518 = vmatpush.msra.mxu0 0.0
        %519 = vmatpush.msra.mxu0 0.0
        %520 = vmatpush.msra.mxu0 0.0
        %521 = vmatpush.msra.mxu0 0.0
        %522 = vmatpush.msra.mxu0 0.0
        %523 = vmatpush.msra.mxu0 0.0
        %524 = vmatpush.msra.mxu0 0.0
        %525 = vmatpush.msra.mxu0 0.0
        %526 = vmatpush.msra.mxu0 0.0
        %527 = vmatpush.msra.mxu0 0.0
        %528 = vmatpush.msra.mxu0 0.0
        %529 = vmatpush.msra.mxu0 0.0
        %530 = vmatpush.msra.mxu0 0.0
        %531 = vmatpush.msra.mxu0 %v514
        %532 = vmatmul.f32.gmra.mxu0 %v510
        %v533 = vpop.f32.mrf.mxu0
        %v534 = vadd.f32 %v507, %v533
        %535 = vdwg.mxu0
        %v536 = vxor.u32 %v534, 2147483648
        %v537 = vmul.f32 %v536, 1.442695
        %v538 = vpow.pop %v537
        %v539 = vadd.f32 %v538, 1.0
        %v540 = vrcp.pop %v539
        %v541 = vmul.f32 %v539, %v540
        %v542 = vsub.f32 1.0, %v541
        %v543 = vmul.f32 %v540, %v542
        %v544 = vadd.f32 %v540, %v543
        %vm545 = vweird.f32 %v539
        %vm546 = vweird.f32 %v540
        %vm547 = vmor %vm545, %vm546
        %v548 = vsel %vm547, %v540, %v544
        %v549 = vand.u32 2147483647, %v539
        %vm550 = vcmp.eq.f32.partialorder %v549, 8.507059e+37
        %v551 = vand.u32 %v539, 2147483648
        %v552 = vor.u32 1.1754944e-38, %v551
        %v553 = vsel %vm550, %v552, %v548
        %v554 = vmul.f32 1.0, %v553
        %v555 = vld [vmem:[%s8] sm:$0xf]
        %v556 = vld [vmem:[%s9] sm:$0xf]
        %v558 = vsel %vm508, %v555, 0
        %560 = vmatpush.msra.mxu0 0.0
        %561 = vmatpush.msra.mxu0 0.0
        %562 = vmatpush.msra.mxu0 0.0
        %563 = vmatpush.msra.mxu0 0.0
        %564 = vmatpush.msra.mxu0 0.0
        %565 = vmatpush.msra.mxu0 0.0
        %566 = vmatpush.msra.mxu0 0.0
        %567 = vmatpush.msra.mxu0 0.0
        %568 = vmatpush.msra.mxu0 0.0
        %569 = vmatpush.msra.mxu0 0.0
        %570 = vmatpush.msra.mxu0 0.0
        %571 = vmatpush.msra.mxu0 0.0
        %572 = vmatpush.msra.mxu0 0.0
        %573 = vmatpush.msra.mxu0 0.0
        %574 = vmatpush.msra.mxu0 0.0
        %575 = vmatpush.msra.mxu0 %v514
        %576 = vmatmul.f32.gmra.mxu0 %v558
        %v577 = vpop.f32.mrf.mxu0
        %v578 = vadd.f32 %v556, %v577
        %579 = vdwg.mxu0
        %v580 = vxor.u32 %v578, 2147483648
        %v581 = vmul.f32 %v580, 1.442695
        %v582 = vpow.pop %v581
        %v583 = vadd.f32 %v582, 1.0
        %v584 = vrcp.pop %v583
        %v585 = vmul.f32 %v583, %v584
        %v586 = vsub.f32 1.0, %v585
        %v587 = vmul.f32 %v584, %v586
        %v588 = vadd.f32 %v584, %v587
        %vm589 = vweird.f32 %v583
        %vm590 = vweird.f32 %v584
        %vm591 = vmor %vm589, %vm590
        %v592 = vsel %vm591, %v584, %v588
        %v593 = vand.u32 2147483647, %v583
        %vm594 = vcmp.eq.f32.partialorder %v593, 8.507059e+37
        %v595 = vand.u32 %v583, 2147483648
        %v596 = vor.u32 1.1754944e-38, %v595
        %v597 = vsel %vm594, %v596, %v592
        %v598 = vmul.f32 1.0, %v597
        %600 = vset.pattern.permute.xlu0 0
        %601 = vperm.xlu0 %600, %v554
        %v602 = vpop.permute.xlu0 %601
        %v604 = vunpack.c.l.s4 839922192
        %v605 = vunpack.c.0.s8 %v604
        %v606 = vperm.slane %v602, %v605
        %v608 = vmul.f32 %v418, %v606
        %609 = vst [vmem:[%s417] sm:$0xff] %v608
        %611 = vset.pattern.permute.xlu0 0
        %612 = vperm.xlu0 %611, %v598
        %v613 = vpop.permute.xlu0 %612
        %v615 = vunpack.c.l.s4 839922192
        %v616 = vunpack.c.0.s8 %v615
        %v617 = vperm.slane %v613, %v616
        %v619 = vmul.f32 %v419, %v617
        %s620 = scalar_lea.vmem %s417, 8 [#allocation7]
        %621 = vst [vmem:[%s620] sm:$0xff] %v619
        %s622 = sand.u32 %s258, 1
        %s623 = scalar_lea.sflag [#allocation4], %s622
        %s624 = sand.u32 %s258, 1
        %s625 = smul.addr %s624, 16
        %s626 = scalar_lea.vmem [#allocation7], %s625
        // Predicated region
        $region69: #{tpu_custom_call.1} parent=59 // pred_check
          %p627 = pneg %p268
        $region70: #{tpu_custom_call.1} parent=59 // pred_check_branch
          %629 = sbr.rel (%p627) target = $region72
        $region71: #{tpu_custom_call.1} parent=59 // pred_region
          %631 = vsyncadd %s623, 0
          %s632 = smul.addr %s30, 4
          %s633 = smul.addr %s632, 4
          %s634 = scalar_lea.hbm %s10, %s633
          %s635 = sshll.u32 %s626, 4
          %s636 = int_to_ptr.vmem [resolvable:$true] %s635
          %s637 = sshll.u32 %s634, 4
          %s638 = int_to_ptr.hbm [resolvable:$true] %s637
          %643 = dma.vmem_to_hbm [thread:$0]  %s636, 256, %s638, %s623, 128, 128, 8
        $region72: #{tpu_custom_call.1} parent=59 // pred_fallthru
          _
      $region60: #{tpu_custom_call.1} parent=5 // pred_fallthru
        _
      %p644 = scmp.le.s32.totalorder 2, %s25
      // Predicated region
      $region73: #{tpu_custom_call.1} parent=5 // pred_check
        %p645 = pneg %p644
      $region74: #{tpu_custom_call.1} parent=5 // pred_check_branch
        %647 = sbr.rel (%p645) target = $region76
      $region75: #{tpu_custom_call.1} parent=5 // pred_region
        %s648 = ssub.s32 %s25, 2
        // Predicated region
        $region77: #{tpu_custom_call.1} parent=75 // pred_check
          %p649 = pneg %p274
        $region78: #{tpu_custom_call.1} parent=75 // pred_check_branch
          %651 = sbr.rel (%p649) target = $region80
        $region79: #{tpu_custom_call.1} parent=75 // pred_region
          %s652 = sand.u32 %s259, 1
          %s653 = scalar_lea.sflag [#allocation4], %s652
          %s654 = sand.u32 %s259, 1
          %s655 = smul.addr %s654, 16
          %s656 = scalar_lea.vmem [#allocation7], %s655
          %658 = dma.done %s653, 256
        $region80: #{tpu_custom_call.1} parent=75 // pred_fallthru
          _
      $region76: #{tpu_custom_call.1} parent=5 // pred_fallthru
        _
    $region6: #{tpu_custom_call.1} parent=1 // loop_footer
      %s29 = sadd.s32 1, %s25
    $region7: #{tpu_custom_call.1} parent=1 // loop_footer_branch
      %24 = sbr.rel target = $region3
    $region8: #{tpu_custom_call.1} parent=1 // loop_exit
      _
    %659 = vsyncpa [#allocation3], 1
    %s660 = scalar_lea.sflag [#allocation3], 1
    %661 = vsyncpa %s660, 1
    %662 = vsyncpa [#allocation6], 1
    %s663 = scalar_lea.sflag [#allocation6], 1
    %664 = vsyncpa %s663, 1
    %665 = vsyncpa [#allocation4], 1
    %s666 = scalar_lea.sflag [#allocation4], 1
    %667 = vsyncpa %s666, 1

</llo_original>
